<compile_context>
chip_gen: v7x
topology: tpu7x:2x2x1
jax: 0.10.0
libtpu: 0.0.40
codegen_flags: <defaults>
</compile_context>

<pallas_src>
import jax
import jax.numpy as jnp
from jax.experimental import pallas as pl
from jax.experimental.pallas import tpu as pltpu


def _identity_kernel(x_ref, o_ref):
    # Pure pass-through: copy the whole VMEM tile.
    o_ref[...] = x_ref[...]


def _cdiv(a: int, b: int) -> int:
    return -(-a // b)


def _vmem_budget():
    """(tile byte cap, vmem_limit_bytes), generation-aware."""
    try:
        capacity = getattr(pltpu.get_tpu_info(), "vmem_capacity_bytes", 64 << 20)
    except Exception:  # pragma: no cover - conservative fallback off-TPU
        capacity = 64 << 20
    if capacity >= (96 << 20):
        # v5e / v6e: 128 MiB VMEM per core -> 8 MiB tiles, 64 MiB scoped limit.
        return 8 << 20, 64 << 20
    # v7x: 64 MiB physical VMEM (shared with everything) -> stay modest.
    return 4 << 20, 32 << 20


def _choose_2d_layout(total: int):
    """Lane-dense (rows, cols, pad) factorization of `total` elements."""
    # Prefer an exact factorization (no padding copy needed).
    for cols in (1024, 512, 256, 128):
        if total % cols == 0:
            return total // cols, cols, 0
    # Otherwise pad the flattened array up to a lane-dense multiple.
    cols = 1024 if total >= (1 << 17) else 128
    padded = _cdiv(total, cols) * cols
    return padded // cols, cols, padded - total


def _choose_row_tile(rows: int, cols: int, itemsize: int, min_tr: int,
                     cap_bytes: int) -> int:
    """Power-of-two row tile: as large as the VMEM cap allows, but shrunk
    (down to a ~1 MiB tile floor) until the grid has >= 8 steps so both
    v7x TensorCores get several pipelined steps each."""
    row_bytes = cols * itemsize
    tr = min_tr
    while tr * 2 * row_bytes <= cap_bytes and tr * 2 <= rows:
        tr *= 2
    while tr > min_tr and _cdiv(rows, tr) < 8 and tr * row_bytes > (1 << 20):
        tr //= 2
    return tr


def identity(x: jax.Array, *, fast_path: bool = False) -> jax.Array:
    """Pallas identity: returns a tensor identical to x (shape & dtype).

    fast_path=True skips the kernel and returns x directly (zero HBM traffic);
    the default runs the Pallas copy so the op is materialized on device.
    """
    if fast_path:
        return x

    orig_shape = x.shape
    dtype = x.dtype
    total = int(x.size) if x.ndim > 0 else 1
    if total == 0:
        return x  # nothing to copy

    rows, cols, pad = _choose_2d_layout(total)

    flat = x.reshape(-1)
    if pad:
        flat = jnp.pad(flat, (0, pad))
    x2d = flat.reshape(rows, cols)

    itemsize = jnp.dtype(dtype).itemsize
    packing = max(1, 4 // itemsize)      # sublane packing: 1 f32, 2 bf16, 4 int8/fp8
    min_tr = 8 * packing                 # native sublane tile height
    cap_bytes, vmem_limit = _vmem_budget()

    tr = _choose_row_tile(rows, cols, itemsize, min_tr, cap_bytes)

    index_map = lambda i: (i, 0)
    if tr >= rows:
        # Single full-extent block (exempt from the (8,128) divisibility rule).
        grid = (1,)
        block = (rows, cols)
    else:
        grid = (_cdiv(rows, tr),)        # partial last block handled by Pallas
        block = (tr, cols)

    in_spec = pl.BlockSpec(block, index_map)
    if grid[0] >= 4:
        # Deeper input buffering keeps the DMA queue full (nothing to overlap
        # with except the output writeback of adjacent steps).
        try:
            in_spec = pl.BlockSpec(block, index_map, pipeline_mode=pl.Buffered(3))
        except TypeError:
            pass  # older jax without pipeline_mode; 2-deep default is fine

    out2d = pl.pallas_call(
        _identity_kernel,
        out_shape=jax.ShapeDtypeStruct((rows, cols), dtype),
        grid=grid,
        in_specs=[in_spec],
        out_specs=pl.BlockSpec(block, index_map),
        input_output_aliases={0: 0},
        cost_estimate=pl.CostEstimate(
            flops=0,
            transcendentals=0,
            bytes_accessed=2 * rows * cols * itemsize,
        ),
        compiler_params=pltpu.CompilerParams(
            dimension_semantics=("parallel",),
            vmem_limit_bytes=vmem_limit,
        ),
    )(x2d)

    flat_out = out2d.reshape(-1)
    if pad:
        flat_out = flat_out[:total]
    return flat_out.reshape(orig_shape)


if __name__ == "__main__":
    key = jax.random.PRNGKey(0)

    # 1) Small conv-backbone-like input (NCHW), float32 -> single-block path.
    x = jax.random.normal(key, (2, 4, 16, 16), dtype=jnp.float32)
    y = identity(x)
    jax.block_until_ready(y)
    assert y.shape == x.shape, (y.shape, x.shape)
    assert y.dtype == x.dtype, (y.dtype, x.dtype)
    assert jnp.array_equal(y, x), "identity mismatch (small input)"

    # 2) Larger input -> tiled, multi-step pipelined path (grid >= 4).
    x_big = jax.random.normal(key, (8, 8, 128, 128), dtype=jnp.float32)
    y_big = identity(x_big)
    jax.block_until_ready(y_big)
    assert y_big.shape == x_big.shape and y_big.dtype == x_big.dtype
    assert jnp.array_equal(y_big, x_big), "identity mismatch (tiled input)"

    # 3) Element count not a multiple of 128 -> padded lane-dense path.
    x_odd = jax.random.normal(key, (3, 5, 7), dtype=jnp.float32)
    y_odd = identity(x_odd)
    jax.block_until_ready(y_odd)
    assert y_odd.shape == x_odd.shape
    assert jnp.array_equal(y_odd, x_odd), "identity mismatch (padded input)"

    # 4) Sub-32-bit dtype (bf16) -> dtype-aware minimum sublane tile.
    x_bf16 = x.astype(jnp.bfloat16)
    y_bf16 = identity(x_bf16)
    jax.block_until_ready(y_bf16)
    assert y_bf16.dtype == jnp.bfloat16
    assert jnp.array_equal(y_bf16, x_bf16), "identity mismatch (bf16 input)"

    print("KERNEL_OK")
</pallas_src>

<mosaic_0001>
module attributes {stable_mosaic.version = 11 : i64} {
  func.func @_identity_kernel(%arg0: i32, %arg1: memref<2x1024xf32, #tpu.memory_space<vmem>>, %arg2: memref<2x1024xf32, #tpu.memory_space<vmem>>) attributes {dimension_semantics = [#tpu.dimension_semantics<parallel>], iteration_bounds = array<i64: 1>, scalar_prefetch = 0 : i64, scratch_operands = 0 : i64, tpu.core_type = #tpu.core_type<tc>, window_params = [{transform_indices = @transform_0, window_bounds = array<i64: 2, 1024>}, {transform_indices = @transform_1, window_bounds = array<i64: 2, 1024>}]} {
    %c0 = arith.constant 0 : index
    %c0_0 = arith.constant 0 : index
    %0 = vector.load %arg1[%c0, %c0_0] : memref<2x1024xf32, #tpu.memory_space<vmem>>, vector<2x1024xf32>
    %c0_1 = arith.constant 0 : index
    %c0_2 = arith.constant 0 : index
    %1 = vector.load %arg2[%c0_1, %c0_2] : memref<2x1024xf32, #tpu.memory_space<vmem>>, vector<2x1024xf32>
    tpu.vector_store %arg2[%c0_1, %c0_2], %0 {strides = array<i32>} : memref<2x1024xf32, #tpu.memory_space<vmem>>, vector<2x1024xf32>,
    return
  }
  func.func @transform_0(%arg0: i32) -> (i32, i32) {
    %c0_i32 = arith.constant 0 : i32
    %c0_i32_0 = arith.constant 0 : i32
    return %arg0, %c0_i32 : i32, i32
  }
  func.func @transform_1(%arg0: i32) -> (i32, i32) {
    %c0_i32 = arith.constant 0 : i32
    %c0_i32_0 = arith.constant 0 : i32
    return %arg0, %c0_i32 : i32, i32
  }
}

</mosaic_0001>

<llo_original>
// kernel: tpu_custom_call.1
$region0: #{tpu_custom_call.1}
  #allocation0 [shape = 'u32[]', space=smem, size = 0x4, offset = 0x4, fixed_abs, tag = 'smem constant byte address 0x4 - core index']
  #allocation1 [shape = 'u32[144,128]{1,0:T(1,128)}', space=vmem, size = 0x12000, scoped, tag = 'internal scratch']
  %s0 = inlined_call_operand.hbm [shape: f32[2,1024], index: 0, kind: input, shape index: {}, may-alias: {0,1}]
  %s1 = inlined_call_operand.hbm [shape: f32[2,1024], index: 1, kind: output, shape index: {}, may-alias: {0,1}]
  %s2 = sld [smem:[#allocation0]]
  $region18: #{tpu_custom_call.1} parent=0
    _
  %s4 = ssub.s32 1, %s2
  %s5 = scalar_select 0, %s4, %s2
  $region1: #{tpu_custom_call.1} parent=0
    #allocation2 [shape = 'u8[8192]{0}', space=vmem, size = 0x2000, scoped, tag = 'input window, operand 0, single buffered']
    #allocation3 [shape = 's32[1]{0}', space=sflag, size = 0x4, scoped, tag = 'scoped memory for tpu_custom_call.1']
    #allocation4 [shape = 's32[1]{0}', space=sflag, size = 0x4, scoped, tag = 'scoped memory for tpu_custom_call.1']
    #allocation5 [shape = 'u8[8192]{0}', space=vmem, size = 0x2000, scoped, tag = 'output window, operand 0, single buffered']
    %6 = vsyncpa [#allocation3], 0
    %7 = vsyncpa [#allocation4], 0
    // Predicated region
    $region2: #{tpu_custom_call.1} parent=1 // pred_check
      _
    $region3: #{tpu_custom_call.1} parent=1 // pred_check_branch
      %9 = sbr.rel (0) target = $region5
    $region4: #{tpu_custom_call.1} parent=1 // pred_region
      %s11 = ssub.s32 256, 256
      %12 = vsyncadd [#allocation3], %s11
      %s14 = sshll.u32 [#allocation2], 4
      %s15 = int_to_ptr.vmem [resolvable:$true] %s14
      %17 = dma.hbm_to_vmem [thread:$0]  %s0, 256, %s15, [#allocation3]
    $region5: #{tpu_custom_call.1} parent=1 // pred_fallthru
      _
    // Predicated region
    $region6: #{tpu_custom_call.1} parent=1 // pred_check
      _
    $region7: #{tpu_custom_call.1} parent=1 // pred_check_branch
      %19 = sbr.rel (0) target = $region9
    $region8: #{tpu_custom_call.1} parent=1 // pred_region
      %20 = dma.done [#allocation3], 256
    $region9: #{tpu_custom_call.1} parent=1 // pred_fallthru
      _
    %v21 = vld [vmem:[#allocation2] sm:$0xff]
    %v22 = vld [vmem:[#allocation2 + $0x8] sm:$0xff]
    %23 = vst [vmem:[#allocation5] sm:$0xff] %v21
    %24 = vst [vmem:[#allocation5 + $0x8] sm:$0xff] %v22
    // Predicated region
    $region10: #{tpu_custom_call.1} parent=1 // pred_check
      _
    $region11: #{tpu_custom_call.1} parent=1 // pred_check_branch
      %26 = sbr.rel (0) target = $region13
    $region12: #{tpu_custom_call.1} parent=1 // pred_region
      %s28 = ssub.s32 256, 256
      %29 = vsyncadd [#allocation4], %s28
      %s31 = sshll.u32 [#allocation5], 4
      %s32 = int_to_ptr.vmem [resolvable:$true] %s31
      %34 = dma.vmem_to_hbm [thread:$0]  %s32, 256, %s1, [#allocation4]
    $region13: #{tpu_custom_call.1} parent=1 // pred_fallthru
      _
    // Predicated region
    $region14: #{tpu_custom_call.1} parent=1 // pred_check
      _
    $region15: #{tpu_custom_call.1} parent=1 // pred_check_branch
      %36 = sbr.rel (0) target = $region17
    $region16: #{tpu_custom_call.1} parent=1 // pred_region
      %37 = dma.done [#allocation4], 256
    $region17: #{tpu_custom_call.1} parent=1 // pred_fallthru
      _
    %38 = vsyncpa [#allocation3], 1
    %39 = vsyncpa [#allocation4], 1

</llo_original>
